<compile_context>
chip_gen: v7x
topology: tpu7x:2x2x1
jax: 0.10.0
libtpu: 0.0.40
codegen_flags: <defaults>
</compile_context>

<pallas_src>
import functools

import jax
import jax.numpy as jnp
from jax.scipy import special as jsp
from jax.experimental import pallas as pl
from jax.experimental.pallas import tpu as pltpu

# ---------------------------------------------------------------------------
# Deterministic stand-ins for the module's `global_parameters` (no file I/O).
# ---------------------------------------------------------------------------
MAX_P = 1.0                       # global_parameters['M']
MIN_P = 0.0                       # global_parameters['m']
L_P = 4                           # global_parameters['L']
DEBIAS = float(jsp.digamma(float(L_P)) - jnp.log(float(L_P)))

_SUM_TARGET_BYTES = 4 << 20       # ~4 MiB per input block for the streaming reduce
_GAUSS_TARGET_BYTES = 2 << 20     # ~2 MiB per input block for the stats kernel
_GAUSS_MAX_COLS = 8192            # cap -> bounded static unroll of lane-group folds
_JS_TARGET_BYTES = 1 << 20        # ~1 MiB per input block for the JS kernel
_JS_MAX_COLS = 8192


def _round_up(a, b):
    return (a + b - 1) // b * b


def _params(sem, in_bytes, out_bytes, temp_bytes):
    """Per-call scoped-VMEM limit from actual block bytes (double-buffered I/O
    + in-kernel f32 temporaries), clamped so it also fits v7x's 64 MiB VMEM."""
    need = 2 * in_bytes + 2 * out_bytes + temp_bytes + (2 << 20)
    limit = int(min(max(need, 24 << 20), 48 << 20))
    return pltpu.CompilerParams(dimension_semantics=sem, vmem_limit_bytes=limit)


# ---------------------------------------------------------------------------
# Kernel 1: generic "sum of f(x, y)" over the whole tensor.
# Each grid step streams a (tile_rows, 128) slab and writes a 128-lane partial
# sum; only the last block (and only if a ragged tail exists) pays for masking.
# ---------------------------------------------------------------------------
def _sum_kernel(elem_fn, n_valid, tile_rows, needs_mask, x_ref, y_ref, o_ref):
    x = x_ref[...].astype(jnp.float32)
    y = y_ref[...].astype(jnp.float32)
    vals = elem_fn(x, y)
    if needs_mask:
        last = pl.num_programs(0) - 1

        @pl.when(pl.program_id(0) != last)
        def _():
            o_ref[0, 0] = jnp.sum(vals, axis=0)

        @pl.when(pl.program_id(0) == last)
        def _():
            base = last * (tile_rows * 128)
            r = jax.lax.broadcasted_iota(jnp.int32, vals.shape, 0)
            c = jax.lax.broadcasted_iota(jnp.int32, vals.shape, 1)
            good = (base + r * 128 + c) < n_valid
            o_ref[0, 0] = jnp.sum(jnp.where(good, vals, 0.0), axis=0)
    else:
        o_ref[0, 0] = jnp.sum(vals, axis=0)


def _pallas_reduce_sum(elem_fn, x, y):
    """sum(elem_fn(x, y)) over every element, accumulated in f32."""
    n = x.size
    itemsize = max(x.dtype.itemsize, y.dtype.itemsize)
    rem = n % 128
    lane_rows = n // 128 + (1 if rem else 0)
    rows_tgt = max(8, (_SUM_TARGET_BYTES // (128 * itemsize)) // 8 * 8)
    tile_rows = min(rows_tgt, _round_up(lane_rows, 8))
    g = pl.cdiv(lane_rows, tile_rows)
    needs_mask = (g * tile_rows * 128 != n)

    def prep(a):
        flat = a.reshape(-1)
        if rem:
            # pad only the ragged final lane group (<128 elems); finite filler,
            # masked in-kernel anyway.
            flat = jnp.pad(flat, (0, 128 - rem), constant_values=1)
        return flat.reshape(lane_rows, 128)

    x2, y2 = prep(x), prep(y)
    partials = pl.pallas_call(
        functools.partial(_sum_kernel, elem_fn, n, tile_rows, needs_mask),
        out_shape=jax.ShapeDtypeStruct((g, 1, 128), jnp.float32),
        grid_spec=pltpu.PrefetchScalarGridSpec(
            num_scalar_prefetch=0,
            grid=(g,),
            in_specs=[pl.BlockSpec((tile_rows, 128), lambda i: (i, 0)),
                      pl.BlockSpec((tile_rows, 128), lambda i: (i, 0))],
            out_specs=pl.BlockSpec((1, 1, 128), lambda i: (i, 0, 0))),
        compiler_params=_params(("parallel",),
                                in_bytes=2 * tile_rows * 128 * itemsize,
                                out_bytes=128 * 4,
                                temp_bytes=4 * tile_rows * 128 * 4),
    )(x2, y2)
    return jnp.sum(partials)


# ---------------------------------------------------------------------------
# Kernel 2: per-row statistics for Gaussian_loss on the contiguous (R, HW) view
# (R = B*C, no transpose).  Grid (r tiles [parallel], hw tiles [reduction]);
# resident (tile_R, 128) f32 accumulators for sum(x), sum(x^2), sum((x-y)^2).
# ---------------------------------------------------------------------------
def _gauss_stats_kernel(hw_valid, tile_cols, needs_mask,
                        x_ref, y_ref, sx_ref, sx2_ref, sd2_ref):
    k = pl.program_id(1)

    @pl.when(k == 0)
    def _():
        sx_ref[...] = jnp.zeros_like(sx_ref)
        sx2_ref[...] = jnp.zeros_like(sx2_ref)
        sd2_ref[...] = jnp.zeros_like(sd2_ref)

    x = x_ref[...].astype(jnp.float32)     # (tile_R, tile_cols)
    y = y_ref[...].astype(jnp.float32)
    d = x - y
    if needs_mask:
        col = k * tile_cols + jax.lax.broadcasted_iota(jnp.int32, x.shape, 1)
        valid = col < hw_valid
        x = jnp.where(valid, x, 0.0)
        d = jnp.where(valid, d, 0.0)

    sx = sx_ref[...]
    sx2 = sx2_ref[...]
    sd2 = sd2_ref[...]
    nb = tile_cols // 128
    for b in range(nb):                    # lane-group folds: static slices, VPU adds
        xs = x[:, b * 128:(b + 1) * 128]
        ds = d[:, b * 128:(b + 1) * 128]
        sx = sx + xs
        sx2 = sx2 + xs * xs
        sd2 = sd2 + ds * ds
    sx_ref[...] = sx
    sx2_ref[...] = sx2
    sd2_ref[...] = sd2


def _pallas_gauss_stats(x2, y2):
    R, HW = x2.shape
    itemsize = max(x2.dtype.itemsize, y2.dtype.itemsize)
    tile_R = min(_round_up(R, 8), 256)
    max_cols = _round_up(HW, 128)
    tgt_cols = max(128, (_GAUSS_TARGET_BYTES // (tile_R * itemsize)) // 128 * 128)
    tile_cols = min(max_cols, min(tgt_cols, _GAUSS_MAX_COLS))
    g_r = pl.cdiv(R, tile_R)
    g_k = pl.cdiv(HW, tile_cols)
    needs_mask = (g_k * tile_cols != HW)
    R_pad = g_r * tile_R

    outs = pl.pallas_call(
        functools.partial(_gauss_stats_kernel, HW, tile_cols, needs_mask),
        out_shape=tuple(jax.ShapeDtypeStruct((R_pad, 128), jnp.float32)
                        for _ in range(3)),
        grid_spec=pltpu.PrefetchScalarGridSpec(
            num_scalar_prefetch=0,
            grid=(g_r, g_k),
            in_specs=[pl.BlockSpec((tile_R, tile_cols), lambda r, k: (r, k)),
                      pl.BlockSpec((tile_R, tile_cols), lambda r, k: (r, k))],
            out_specs=[pl.BlockSpec((tile_R, 128), lambda r, k: (r, 0))
                       for _ in range(3)]),
        compiler_params=_params(("parallel", "arbitrary"),
                                in_bytes=2 * tile_R * tile_cols * itemsize,
                                out_bytes=3 * tile_R * 128 * 4,
                                temp_bytes=6 * tile_R * tile_cols * 4),
    )(x2, y2)
    return tuple(jnp.sum(o[:R], axis=1) for o in outs)   # three (R,) vectors


# ---------------------------------------------------------------------------
# Kernel 3: Jensen-Shannon divergence partial sums.  Softmax over the channel
# axis (dim=1 of NCHW); PyTorch's F.kl_div(input=m, target=t) pointwise
#   t*log(t) - t*m   (m NOT log-transformed, exactly as in the reference module).
# Single exp per input per element; per-(b, j) 128-lane partials; both grid
# axes parallel (two v7x TensorCores even at B == 1).
# ---------------------------------------------------------------------------
def _js_kernel(hw_valid, block_cols, needs_mask, x_ref, y_ref, o_ref):
    x = x_ref[...].astype(jnp.float32)     # (1, C, block_cols)
    y = y_ref[...].astype(jnp.float32)
    lx = x * (MAX_P - MIN_P) + MIN_P
    ly = y * (MAX_P - MIN_P) + MIN_P

    def softmax_pair(l):
        mx = jnp.max(l, axis=1, keepdims=True)       # (1,1,block_cols)
        sh = l - mx
        e = jnp.exp(sh)                               # one exp per element
        s = jnp.sum(e, axis=1, keepdims=True)
        p = e * (1.0 / s)                             # per-column reciprocal, cheap
        log_p = sh - jnp.log(s)                       # per-column log, cheap
        return p, log_p

    p, log_p = softmax_pair(lx)
    q, log_q = softmax_pair(ly)
    m = 0.5 * (p + q)
    contrib = p * (log_p - m) + q * (log_q - m)
    if needs_mask:
        col = (pl.program_id(1) * block_cols
               + jax.lax.broadcasted_iota(jnp.int32, contrib.shape, 2))
        contrib = jnp.where(col < hw_valid, contrib, 0.0)

    csum = jnp.sum(contrib, axis=1)                   # channel (sublane) reduce
    nb = block_cols // 128
    part = csum[:, 0:128]
    for b in range(1, nb):                            # lane-group folds, VPU adds
        part = part + csum[:, b * 128:(b + 1) * 128]
    o_ref[0, 0] = part                                # unmasked lane-dense store


def _pallas_js_sum(x3, y3):
    B, C, HW = x3.shape
    itemsize = max(x3.dtype.itemsize, y3.dtype.itemsize)
    max_cols = _round_up(HW, 128)
    tgt = max(128, (_JS_TARGET_BYTES // (C * itemsize)) // 128 * 128)
    block_cols = min(max_cols, min(tgt, _JS_MAX_COLS))
    t = pl.cdiv(HW, block_cols)
    needs_mask = (t * block_cols != HW)

    out = pl.pallas_call(
        functools.partial(_js_kernel, HW, block_cols, needs_mask),
        out_shape=jax.ShapeDtypeStruct((B, t, 1, 128), jnp.float32),
        grid_spec=pltpu.PrefetchScalarGridSpec(
            num_scalar_prefetch=0,
            grid=(B, t),
            in_specs=[pl.BlockSpec((1, C, block_cols), lambda b, j: (b, 0, j)),
                      pl.BlockSpec((1, C, block_cols), lambda b, j: (b, 0, j))],
            out_specs=pl.BlockSpec((1, 1, 1, 128), lambda b, j: (b, j, 0, 0))),
        compiler_params=_params(("parallel", "parallel"),
                                in_bytes=2 * C * block_cols * itemsize,
                                out_bytes=128 * 4,
                                temp_bytes=12 * C * block_cols * 4),
    )(x3, y3)
    return jnp.sum(out)


# ---------------------------------------------------------------------------
# Python wrapper reproducing Loss_funct.forward(X_hat, Y_reference, select).
# ---------------------------------------------------------------------------
def loss_funct(X_hat, Y_reference, select):
    B, C, H, W = X_hat.shape
    N = X_hat.size

    if select == 'mse':
        return _pallas_reduce_sum(lambda x, y: (x - y) ** 2, X_hat, Y_reference) / N
    elif select == 'mae':
        return _pallas_reduce_sum(lambda x, y: jnp.abs(x - y), X_hat, Y_reference) / N
    elif select in ('cross_entropy', 'neg_log_likelihood'):
        # TODO(synk): class-index-target losses use a (logits, int-label) contract
        # incompatible with the same-shape-tensor interface exercised here.
        raise NotImplementedError(select)
    elif select == 'co_log_likelihood':
        return _pallas_reduce_sum(lambda x, y: 0.5 * x + y / x, X_hat, Y_reference)
    elif select == 'mse_debias':
        s = _pallas_reduce_sum(lambda x, y: (x - y + DEBIAS) ** 2, X_hat, Y_reference)
        return (1.0 / B) * (s / N)
    elif select == 'kullback_leibler':
        # F.kl_div(input=X_hat (log-probs), target=Y (probs), reduction='batchmean')
        s = _pallas_reduce_sum(
            lambda x, y: jnp.where(y != 0.0, y * jnp.log(y), 0.0) - y * x,
            X_hat, Y_reference)
        return s / B
    elif select == 'custom_cross_entropy':
        # TODO(synk): exp(exp(y-x)) overflows f32 for (y-x) > ~6.6, matching the
        # PyTorch reference; inputs are assumed range-limited.
        def f(x, y):
            d = y - x
            return -(d + jnp.exp(d) + jnp.exp(jnp.exp(d)))
        return _pallas_reduce_sum(f, X_hat, Y_reference) / N
    elif select == 'jensen_shannon_divergence':
        total = _pallas_js_sum(X_hat.reshape(B, C, H * W),
                               Y_reference.reshape(B, C, H * W))
        return 0.5 * total / B
    elif select == 'L1-L2':
        # fused single HBM pass: 0.7*MSE + 0.3*MAE
        s = _pallas_reduce_sum(
            lambda x, y: 0.7 * (x - y) ** 2 + 0.3 * jnp.abs(x - y), X_hat, Y_reference)
        return s / N
    elif select == 'HuberLoss':
        def f(x, y):
            d = x - y
            ad = jnp.abs(d)
            return jnp.where(ad < 1.0, 0.5 * d * d, ad - 0.5)
        return _pallas_reduce_sum(f, X_hat, Y_reference) / N
    elif select == 'Gaussian_loss':
        # contiguous (B*C, H*W) view: no NCHW->CNHW transpose pass through HBM
        sx_r, sx2_r, sd2_r = _pallas_gauss_stats(
            X_hat.reshape(B * C, H * W), Y_reference.reshape(B * C, H * W))
        sx = sx_r.reshape(B, C).sum(axis=0)
        sx2 = sx2_r.reshape(B, C).sum(axis=0)
        sd2 = sd2_r.reshape(B, C).sum(axis=0)
        Nc = B * H * W
        mean = sx / Nc
        # TODO(synk): single-pass E[x^2]-E[x]^2 population variance (matches torch
        # var(unbiased=False)); a two-pass scheme would be more robust numerically.
        var = jnp.maximum(sx2 / Nc - mean ** 2, 1e-6)   # gaussian_nll_loss eps clamp
        per_channel = 0.5 * (Nc * jnp.log(var) + sd2 / var)
        return jnp.sum(per_channel) / N
    else:
        raise ValueError(f'Unsupported loss function: {select}')


# ---------------------------------------------------------------------------
# Plain-JAX references for correctness checks.
# ---------------------------------------------------------------------------
def _ref_loss(x, y, select):
    x = x.astype(jnp.float32)
    y = y.astype(jnp.float32)
    B = x.shape[0]
    d = x - y
    if select == 'mse':
        return jnp.mean(d ** 2)
    if select == 'mae':
        return jnp.mean(jnp.abs(d))
    if select == 'co_log_likelihood':
        return jnp.sum(0.5 * x + y / x)
    if select == 'mse_debias':
        return (1.0 / B) * jnp.mean((d + DEBIAS) ** 2)
    if select == 'kullback_leibler':
        return jnp.sum(jsp.xlogy(y, y) - y * x) / B
    if select == 'custom_cross_entropy':
        e = y - x
        return jnp.mean(-(e + jnp.exp(e) + jnp.exp(jnp.exp(e))))
    if select == 'jensen_shannon_divergence':
        lx = x * (MAX_P - MIN_P) + MIN_P
        ly = y * (MAX_P - MIN_P) + MIN_P
        p = jax.nn.softmax(lx, axis=1)
        q = jax.nn.softmax(ly, axis=1)
        m = 0.5 * (p + q)
        kl_pm = jnp.sum(jsp.xlogy(p, p) - p * m) / B
        kl_qm = jnp.sum(jsp.xlogy(q, q) - q * m) / B
        return 0.5 * (kl_pm + kl_qm)
    if select == 'L1-L2':
        return 0.7 * jnp.mean(d ** 2) + 0.3 * jnp.mean(jnp.abs(d))
    if select == 'HuberLoss':
        ad = jnp.abs(d)
        return jnp.mean(jnp.where(ad < 1.0, 0.5 * d * d, ad - 0.5))
    if select == 'Gaussian_loss':
        var = jnp.maximum(jnp.var(x, axis=(0, 2, 3)), 1e-6)[None, :, None, None]
        return jnp.mean(0.5 * (jnp.log(var) + d ** 2 / var))
    raise ValueError(select)


if __name__ == "__main__":
    key = jax.random.PRNGKey(0)
    k1, k2 = jax.random.split(key)
    B, C, H, W = 2, 4, 16, 16
    # strictly positive inputs keep y/x and log(y) finite for all branches
    X_hat = jax.random.uniform(k1, (B, C, H, W), jnp.float32, 0.1, 1.0)
    Y_ref = jax.random.uniform(k2, (B, C, H, W), jnp.float32, 0.1, 1.0)

    selects = ['mse', 'mae', 'co_log_likelihood', 'mse_debias', 'kullback_leibler',
               'custom_cross_entropy', 'jensen_shannon_divergence', 'L1-L2',
               'HuberLoss', 'Gaussian_loss']
    for sel in selects:
        val = jax.block_until_ready(loss_funct(X_hat, Y_ref, sel))
        ref = jax.block_until_ready(_ref_loss(X_hat, Y_ref, sel))
        assert bool(jnp.isfinite(val)), (sel, float(val))
        tol = 2e-4 * max(1.0, abs(float(ref)))
        assert abs(float(val) - float(ref)) <= tol, (sel, float(val), float(ref))

    print("KERNEL_OK")
</pallas_src>

<mosaic_0001>
module attributes {stable_mosaic.version = 11 : i64} {
  func.func @_sum_kernel(%arg0: i32, %arg1: memref<16x128xf32, #tpu.memory_space<vmem>>, %arg2: memref<16x128xf32, #tpu.memory_space<vmem>>, %arg3: memref<1x1x128xf32, #tpu.memory_space<vmem>>) attributes {dimension_semantics = [#tpu.dimension_semantics<parallel>], iteration_bounds = array<i64: 1>, scalar_prefetch = 0 : i64, scratch_operands = 0 : i64, tpu.core_type = #tpu.core_type<tc>, window_params = [{transform_indices = @transform_0, window_bounds = array<i64: 16, 128>}, {transform_indices = @transform_1, window_bounds = array<i64: 16, 128>}, {transform_indices = @transform_2, window_bounds = array<i64: 1, 1, 128>}]} {
    %c0 = arith.constant 0 : index
    %c0_0 = arith.constant 0 : index
    %0 = vector.load %arg1[%c0, %c0_0] : memref<16x128xf32, #tpu.memory_space<vmem>>, vector<16x128xf32>
    %c0_1 = arith.constant 0 : index
    %c0_2 = arith.constant 0 : index
    %1 = vector.load %arg2[%c0_1, %c0_2] : memref<16x128xf32, #tpu.memory_space<vmem>>, vector<16x128xf32>
    %2 = arith.subf %0, %1 : vector<16x128xf32>
    %3 = arith.mulf %2, %2 : vector<16x128xf32>
    %cst = arith.constant dense<0.000000e+00> : vector<128xf32>
    %4 = vector.multi_reduction <add>, %3, %cst [0] : vector<16x128xf32> to vector<128xf32>
    %c0_3 = arith.constant 0 : index
    %c0_4 = arith.constant 0 : index
    %c0_5 = arith.constant 0 : index
    %5 = vector.load %arg3[%c0_3, %c0_4, %c0_5] : memref<1x1x128xf32, #tpu.memory_space<vmem>>, vector<1x1x128xf32>
    %6 = vector.shape_cast %5 : vector<1x1x128xf32> to vector<128xf32>
    %7 = vector.shape_cast %4 : vector<128xf32> to vector<1x1x128xf32>
    tpu.vector_store %arg3[%c0_3, %c0_4, %c0_5], %7 {strides = array<i32>} : memref<1x1x128xf32, #tpu.memory_space<vmem>>, vector<1x1x128xf32>,
    return
  }
  func.func @transform_0(%arg0: i32) -> (i32, i32) {
    %c0_i32 = arith.constant 0 : i32
    %c0_i32_0 = arith.constant 0 : i32
    return %arg0, %c0_i32 : i32, i32
  }
  func.func @transform_1(%arg0: i32) -> (i32, i32) {
    %c0_i32 = arith.constant 0 : i32
    %c0_i32_0 = arith.constant 0 : i32
    return %arg0, %c0_i32 : i32, i32
  }
  func.func @transform_2(%arg0: i32) -> (i32, i32, i32) {
    %c0_i32 = arith.constant 0 : i32
    %c0_i32_0 = arith.constant 0 : i32
    %c0_i32_1 = arith.constant 0 : i32
    return %arg0, %c0_i32, %c0_i32_0 : i32, i32, i32
  }
}

</mosaic_0001>

<llo_original>
// kernel: tpu_custom_call.1
$region0: #{tpu_custom_call.1}
  #allocation0 [shape = 'u32[]', space=smem, size = 0x4, offset = 0x4, fixed_abs, tag = 'smem constant byte address 0x4 - core index']
  #allocation1 [shape = 'u32[144,128]{1,0:T(1,128)}', space=vmem, size = 0x12000, scoped, tag = 'internal scratch']
  %s0 = inlined_call_operand.hbm [shape: f32[16,128], index: 0, kind: input, shape index: {}]
  %s1 = inlined_call_operand.hbm [shape: f32[16,128], index: 1, kind: input, shape index: {}]
  %s2 = inlined_call_operand.hbm [shape: f32[1,1,128], index: 2, kind: output, shape index: {}]
  %s3 = sld [smem:[#allocation0]]
  $region26: #{tpu_custom_call.1} parent=0
    _
  %s5 = ssub.s32 1, %s3
  %s6 = scalar_select 0, %s5, %s3
  $region1: #{tpu_custom_call.1} parent=0
    #allocation2 [shape = 'u8[8192]{0}', space=vmem, size = 0x2000, scoped, tag = 'input window, operand 0, single buffered']
    #allocation3 [shape = 's32[1]{0}', space=sflag, size = 0x4, scoped, tag = 'scoped memory for tpu_custom_call.1']
    #allocation4 [shape = 's32[1]{0}', space=sflag, size = 0x4, scoped, tag = 'scoped memory for tpu_custom_call.1']
    #allocation5 [shape = 'u8[8192]{0}', space=vmem, size = 0x2000, scoped, tag = 'input window, operand 1, single buffered']
    #allocation6 [shape = 's32[1]{0}', space=sflag, size = 0x4, scoped, tag = 'scoped memory for tpu_custom_call.1']
    #allocation7 [shape = 'u8[512]{0}', space=vmem, size = 0x400, scoped, tag = 'output window, operand 0, single buffered']
    %7 = vsyncpa [#allocation3], 0
    %8 = vsyncpa [#allocation6], 0
    %9 = vsyncpa [#allocation4], 0
    // Predicated region
    $region2: #{tpu_custom_call.1} parent=1 // pred_check
      _
    $region3: #{tpu_custom_call.1} parent=1 // pred_check_branch
      %11 = sbr.rel (0) target = $region5
    $region4: #{tpu_custom_call.1} parent=1 // pred_region
      %s13 = ssub.s32 256, 256
      %14 = vsyncadd [#allocation3], %s13
      %s15 = sshll.u32 [#allocation2], 4
      %s16 = int_to_ptr.vmem [resolvable:$true] %s15
      %21 = dma.hbm_to_vmem [thread:$0]  %s0, 256, %s16, [#allocation3], 128, 128, 8
    $region5: #{tpu_custom_call.1} parent=1 // pred_fallthru
      _
    // Predicated region
    $region6: #{tpu_custom_call.1} parent=1 // pred_check
      _
    $region7: #{tpu_custom_call.1} parent=1 // pred_check_branch
      %23 = sbr.rel (0) target = $region9
    $region8: #{tpu_custom_call.1} parent=1 // pred_region
      %s25 = ssub.s32 256, 256
      %26 = vsyncadd [#allocation6], %s25
      %s27 = sshll.u32 [#allocation5], 4
      %s28 = int_to_ptr.vmem [resolvable:$true] %s27
      %33 = dma.hbm_to_vmem [thread:$0]  %s1, 256, %s28, [#allocation6], 128, 128, 8
    $region9: #{tpu_custom_call.1} parent=1 // pred_fallthru
      _
    // Predicated region
    $region10: #{tpu_custom_call.1} parent=1 // pred_check
      _
    $region11: #{tpu_custom_call.1} parent=1 // pred_check_branch
      %35 = sbr.rel (0) target = $region13
    $region12: #{tpu_custom_call.1} parent=1 // pred_region
      %36 = dma.done [#allocation3], 256
    $region13: #{tpu_custom_call.1} parent=1 // pred_fallthru
      _
    // Predicated region
    $region14: #{tpu_custom_call.1} parent=1 // pred_check
      _
    $region15: #{tpu_custom_call.1} parent=1 // pred_check_branch
      %38 = sbr.rel (0) target = $region17
    $region16: #{tpu_custom_call.1} parent=1 // pred_region
      %39 = dma.done [#allocation6], 256
    $region17: #{tpu_custom_call.1} parent=1 // pred_fallthru
      _
    %v40 = vld [vmem:[#allocation2] sm:$0xff]
    %v41 = vld [vmem:[#allocation2 + $0x8] sm:$0xff]
    %v42 = vld [vmem:[#allocation5] sm:$0xff]
    %v43 = vld [vmem:[#allocation5 + $0x8] sm:$0xff]
    %v44 = vsub.f32 %v40, %v42
    %v45 = vsub.f32 %v41, %v43
    %v46 = vmul.f32 %v44, %v44
    %v47 = vmul.f32 %v45, %v45
    %v48 = vadd.f32 %v46, %v47
    %v49 = vrot.slane %v48, 4
    %v50 = vadd.f32 %v48, %v49
    %v51 = vrot.slane %v50, 2
    %v52 = vadd.f32 %v50, %v51
    %v53 = vrot.slane %v52, 1
    %v54 = vadd.f32 %v52, %v53
    %55 = vst [vmem:[#allocation7] sm:$0x1] %v54
    // Predicated region
    $region18: #{tpu_custom_call.1} parent=1 // pred_check
      _
    $region19: #{tpu_custom_call.1} parent=1 // pred_check_branch
      %57 = sbr.rel (0) target = $region21
    $region20: #{tpu_custom_call.1} parent=1 // pred_region
      %s59 = ssub.s32 16, 16
      %60 = vsyncadd [#allocation4], %s59
      %s62 = sshll.u32 [#allocation7], 4
      %s63 = int_to_ptr.vmem [resolvable:$true] %s62
      %65 = dma.vmem_to_hbm [thread:$0]  %s63, 16, %s2, [#allocation4]
    $region21: #{tpu_custom_call.1} parent=1 // pred_fallthru
      _
    // Predicated region
    $region22: #{tpu_custom_call.1} parent=1 // pred_check
      _
    $region23: #{tpu_custom_call.1} parent=1 // pred_check_branch
      %67 = sbr.rel (0) target = $region25
    $region24: #{tpu_custom_call.1} parent=1 // pred_region
      %68 = dma.done [#allocation4], 16
    $region25: #{tpu_custom_call.1} parent=1 // pred_fallthru
      _
    %69 = vsyncpa [#allocation3], 1
    %70 = vsyncpa [#allocation6], 1
    %71 = vsyncpa [#allocation4], 1

</llo_original>
